<compile_context>
chip_gen: v7x
topology: tpu7x:2x2x1
jax: 0.10.0
libtpu: 0.0.40
codegen_flags: <defaults>
</compile_context>

<pallas_src>
import functools

import jax
import jax.numpy as jnp
from jax import lax
from jax.experimental import pallas as pl
from jax.experimental.pallas import tpu as pltpu

_PAIRWISE_EPS = 1e-6  # matches torch.nn.functional.pairwise_distance default


def _contrastive_kernel(o1_ref, o2_ref, lbl_ref, out_ref, acc_ref, *,
                        margin, batch, tile, steps_per_split, needs_mask):
    step = pl.program_id(1)

    @pl.when(step == 0)
    def _init():
        acc_ref[...] = jnp.zeros_like(acc_ref)

    x = o1_ref[...].astype(jnp.float32)                          # (tb, D)
    y = o2_ref[...].astype(jnp.float32)                          # (tb, D)
    lbl = jnp.maximum(lbl_ref[...].astype(jnp.float32), 0.0)     # relu(label), (1, tb)

    # Euclidean pairwise distance per row (torch eps semantics).
    diff = x - y + _PAIRWISE_EPS
    dist_sq = jnp.sum(diff * diff, axis=-1, keepdims=True)       # (tb, 1)
    dist = jnp.sqrt(dist_sq)                                     # EUP
    hinge = jnp.maximum(margin - dist, 0.0)

    # per_row = lbl*dist^2 + (1-lbl)*hinge^2 = hinge^2 + lbl*(dist^2 - hinge^2)
    # (dist*dist mirrors torch.pow(distance, 2) on the sqrt'ed value.)
    pos = dist * dist                                            # (tb, 1)
    neg = hinge * hinge                                          # (tb, 1)
    delta = pos - neg                                            # (tb, 1)

    if needs_mask:
        # Unclamped global block index: rows of a clamped duplicate block or of the
        # padded tail fall outside [0, batch) and must contribute exactly zero.
        g = pl.program_id(0) * steps_per_split + step
        row0 = g * tile
        rows = row0 + lax.broadcasted_iota(jnp.int32, (tile, 1), 0)
        row_ok = rows < batch
        neg = jnp.where(row_ok, neg, 0.0)
        delta = jnp.where(row_ok, delta, 0.0)
        cols = row0 + lax.broadcasted_iota(jnp.int32, (1, tile), 1)
        lbl = jnp.where(cols < batch, lbl, 0.0)

    # (1,tb) @ (tb,1) -> (1,1): label term via the (otherwise idle) MXU; no relayout.
    label_term = jnp.dot(lbl, delta, preferred_element_type=jnp.float32)
    acc_ref[...] += label_term + jnp.sum(neg)

    @pl.when(step == pl.num_programs(1) - 1)
    def _finalize():
        out_ref[...] = acc_ref[...].reshape(out_ref.shape)


def _vmem_capacity_bytes():
    try:
        return int(pltpu.get_tpu_info().vmem_capacity_bytes)
    except Exception:
        return 64 * 1024 * 1024          # conservative (v7x-sized) fallback


def _plan(batch, dim, itemsize, tile):
    """Pick (batch-tile rows, vmem_limit_bytes), generation-aware and byte-sized."""
    d_pad = ((dim + 127) // 128) * 128            # lane padding in the tiled layout
    row_bytes = d_pad * itemsize
    vmem_cap = _vmem_capacity_bytes()
    if vmem_cap >= 96 * 1024 * 1024:              # v5e / v6e: 128 MiB physical VMEM
        per_buf_target = 8 * 1024 * 1024
        base_limit = 64 * 1024 * 1024
    else:                                          # v7x: 64 MiB physical VMEM per TC
        per_buf_target = 5 * 1024 * 1024
        base_limit = 28 * 1024 * 1024

    tb = per_buf_target // max(row_bytes, 1)
    tb = max(128, (tb // 128) * 128)              # lane/sublane aligned for any dtype
    if tile is not None:
        tb = min(tb, max(128, (int(tile) // 128) * 128))
    if batch <= tb:
        tb = batch                                 # single block covers the full batch

    # 2 inputs x 2 pipeline buffers + double-buffered (1, tb) label + slack.
    need = 4 * tb * row_bytes + 2 * 8 * tb * 4 + (2 << 20)
    limit = max(base_limit, need + (4 << 20))
    limit = min(limit, max(base_limit, vmem_cap - (8 << 20)))
    return tb, limit


def contrastive_loss(output1, output2, label, *, margin=2.0, tile=None):
    """Pallas-backed ContrastiveLoss.forward.

    output1 / output2: (B, D); label: (B,).  Returns a scalar f32 loss.
    """
    B, D = output1.shape
    assert output2.shape == (B, D)
    label_row = label.reshape(1, B)                # lane-dense label layout

    itemsize = jnp.dtype(output1.dtype).itemsize
    tb, vmem_limit = _plan(B, D, itemsize, tile)

    steps_total = pl.cdiv(B, tb)
    num_split = 2 if steps_total >= 2 else 1       # v7x: one split per TensorCore
    steps_per_split = pl.cdiv(steps_total, num_split)
    needs_mask = (steps_total * tb != B) or (num_split * steps_per_split != steps_total)

    def data_map(c, i):
        return (jnp.minimum(c * steps_per_split + i, steps_total - 1), 0)

    def label_map(c, i):
        return (0, jnp.minimum(c * steps_per_split + i, steps_total - 1))

    kernel = functools.partial(
        _contrastive_kernel,
        margin=float(margin),
        batch=B,
        tile=tb,
        steps_per_split=steps_per_split,
        needs_mask=needs_mask,
    )

    cost = pl.CostEstimate(
        flops=int(5 * B * D + 12 * B),
        transcendentals=int(B),                      # one sqrt per row
        bytes_accessed=int(2 * B * D * itemsize
                           + B * jnp.dtype(label_row.dtype).itemsize
                           + num_split * 4),
    )

    partials = pl.pallas_call(
        kernel,
        out_shape=jax.ShapeDtypeStruct((num_split, 1, 1), jnp.float32),
        grid_spec=pltpu.PrefetchScalarGridSpec(
            num_scalar_prefetch=0,
            grid=(num_split, steps_per_split),
            in_specs=[
                pl.BlockSpec((tb, D), data_map),
                pl.BlockSpec((tb, D), data_map),
                pl.BlockSpec((1, tb), label_map),
            ],
            out_specs=pl.BlockSpec((1, 1, 1), lambda c, i: (c, 0, 0)),
            scratch_shapes=[pltpu.VMEM((1, 1), jnp.float32)],
        ),
        compiler_params=pltpu.CompilerParams(
            dimension_semantics=("parallel", "arbitrary"),
            vmem_limit_bytes=int(vmem_limit),
        ),
        cost_estimate=cost,
    )(output1, output2, label_row)

    return jnp.sum(partials) * (1.0 / B)


def _reference_loss(output1, output2, label, margin=2.0):
    """Plain-JAX reference matching the PyTorch module."""
    lbl = jnp.maximum(label.astype(jnp.float32), 0.0)
    diff = output1.astype(jnp.float32) - output2.astype(jnp.float32) + _PAIRWISE_EPS
    dist = jnp.sqrt(jnp.sum(diff * diff, axis=-1))
    hinge = jnp.maximum(margin - dist, 0.0)
    return jnp.mean(lbl * dist * dist + (1.0 - lbl) * hinge * hinge)


if __name__ == "__main__":
    key = jax.random.PRNGKey(0)
    ks = jax.random.split(key, 9)

    # 1) Small SAC_AE-like shapes: single-block path (grid (1,1)).
    B, D = 8, 32
    o1 = jax.random.normal(ks[0], (B, D), dtype=jnp.float32)
    o2 = jax.random.normal(ks[1], (B, D), dtype=jnp.float32)
    lbl = jax.random.uniform(ks[2], (B,), minval=-1.0, maxval=1.0, dtype=jnp.float32)

    loss = contrastive_loss(o1, o2, lbl)
    jax.block_until_ready(loss)
    ref = _reference_loss(o1, o2, lbl)
    assert jnp.allclose(loss, ref, rtol=1e-5, atol=1e-5), (loss, ref)

    # 2) Tiled + masked path: B not a multiple of the (forced small) tile,
    #    two-way split with a partial tail block on the second split.
    B2, D2 = 200, 32
    o1b = jax.random.normal(ks[3], (B2, D2), dtype=jnp.float32)
    o2b = jax.random.normal(ks[4], (B2, D2), dtype=jnp.float32)
    lblb = jax.random.uniform(ks[5], (B2,), minval=-1.0, maxval=1.0, dtype=jnp.float32)

    loss2 = contrastive_loss(o1b, o2b, lblb, tile=128)
    jax.block_until_ready(loss2)
    ref2 = _reference_loss(o1b, o2b, lblb)
    assert jnp.allclose(loss2, ref2, rtol=1e-5, atol=1e-5), (loss2, ref2)

    # 3) Odd block count: exercises the clamped duplicate block on the 2-way split
    #    (must not double count).
    B3, D3 = 384, 64
    o1c = jax.random.normal(ks[6], (B3, D3), dtype=jnp.float32)
    o2c = jax.random.normal(ks[7], (B3, D3), dtype=jnp.float32)
    lblc = jax.random.uniform(ks[8], (B3,), minval=-1.0, maxval=1.0, dtype=jnp.float32)

    loss3 = contrastive_loss(o1c, o2c, lblc, tile=128)
    jax.block_until_ready(loss3)
    ref3 = _reference_loss(o1c, o2c, lblc)
    assert jnp.allclose(loss3, ref3, rtol=1e-5, atol=1e-5), (loss3, ref3)

    print("KERNEL_OK")
</pallas_src>

<mosaic_0001>
module attributes {stable_mosaic.version = 11 : i64} {
  func.func @_contrastive_kernel(%arg0: i32, %arg1: i32, %arg2: memref<8x32xf32, #tpu.memory_space<vmem>>, %arg3: memref<8x32xf32, #tpu.memory_space<vmem>>, %arg4: memref<1x8xf32, #tpu.memory_space<vmem>>, %arg5: memref<1x1x1xf32, #tpu.memory_space<vmem>>, %arg6: memref<1x1xf32, #tpu.memory_space<vmem>>) attributes {dimension_semantics = [#tpu.dimension_semantics<parallel>, #tpu.dimension_semantics<arbitrary>], iteration_bounds = array<i64: 1, 1>, scalar_prefetch = 0 : i64, scratch_operands = 1 : i64, tpu.core_type = #tpu.core_type<tc>, window_params = [{transform_indices = @transform_0, window_bounds = array<i64: 8, 32>}, {transform_indices = @transform_1, window_bounds = array<i64: 8, 32>}, {transform_indices = @transform_2, window_bounds = array<i64: 1, 8>}, {transform_indices = @transform_3, window_bounds = array<i64: 1, 1, 1>}]} {
    %c0_i32 = arith.constant 0 : i32
    %0 = arith.cmpi eq, %arg1, %c0_i32 : i32
    %1 = arith.extui %0 : i1 to i32
    %c0_i32_0 = arith.constant 0 : i32
    %2 = arith.cmpi ne, %1, %c0_i32_0 : i32
    scf.if %2 {
      %cst_18 = arith.constant 0.000000e+00 : f32
      %35 = vector.broadcast %cst_18 : f32 to vector<1x1xf32>
      %c0_19 = arith.constant 0 : index
      %c0_20 = arith.constant 0 : index
      %36 = vector.load %arg6[%c0_19, %c0_20] : memref<1x1xf32, #tpu.memory_space<vmem>>, vector<1x1xf32>
      tpu.vector_store %arg6[%c0_19, %c0_20], %35 {strides = array<i32>} : memref<1x1xf32, #tpu.memory_space<vmem>>, vector<1x1xf32>,
    } else {
    }
    %c0 = arith.constant 0 : index
    %c0_1 = arith.constant 0 : index
    %3 = vector.load %arg2[%c0, %c0_1] : memref<8x32xf32, #tpu.memory_space<vmem>>, vector<8x32xf32>
    %c0_2 = arith.constant 0 : index
    %c0_3 = arith.constant 0 : index
    %4 = vector.load %arg3[%c0_2, %c0_3] : memref<8x32xf32, #tpu.memory_space<vmem>>, vector<8x32xf32>
    %c0_4 = arith.constant 0 : index
    %c0_5 = arith.constant 0 : index
    %5 = vector.load %arg4[%c0_4, %c0_5] : memref<1x8xf32, #tpu.memory_space<vmem>>, vector<1x8xf32>
    %cst = arith.constant 0.000000e+00 : f32
    %6 = vector.broadcast %cst : f32 to vector<1x8xf32>
    %7 = arith.maximumf %5, %6 : vector<1x8xf32>
    %8 = arith.subf %3, %4 : vector<8x32xf32>
    %cst_6 = arith.constant 9.99999997E-7 : f32
    %9 = vector.broadcast %cst_6 : f32 to vector<8x32xf32>
    %10 = arith.addf %8, %9 : vector<8x32xf32>
    %11 = arith.mulf %10, %10 : vector<8x32xf32>
    %cst_7 = arith.constant dense<0.000000e+00> : vector<8xf32>
    %12 = vector.multi_reduction <add>, %11, %cst_7 [1] : vector<8x32xf32> to vector<8xf32>
    %13 = vector.shape_cast %12 : vector<8xf32> to vector<8x1xf32>
    %14 = math.sqrt %13 : vector<8x1xf32>
    %cst_8 = arith.constant 2.000000e+00 : f32
    %15 = vector.broadcast %cst_8 : f32 to vector<8x1xf32>
    %16 = arith.subf %15, %14 : vector<8x1xf32>
    %cst_9 = arith.constant 0.000000e+00 : f32
    %17 = vector.broadcast %cst_9 : f32 to vector<8x1xf32>
    %18 = arith.maximumf %16, %17 : vector<8x1xf32>
    %19 = arith.mulf %14, %14 : vector<8x1xf32>
    %20 = arith.mulf %18, %18 : vector<8x1xf32>
    %21 = arith.subf %19, %20 : vector<8x1xf32>
    %cst_10 = arith.constant dense<0.000000e+00> : vector<1x1xf32>
    %22 = tpu.matmul %7, %21, %cst_10 {dimension_numbers = #tpu.dot_dimension_numbers<[1], [0], [0], [1], [0, 0, 1, 1], [], []>} : vector<1x8xf32>, vector<8x1xf32>, vector<1x1xf32> -> vector<1x1xf32>
    %c0_11 = arith.constant 0 : index
    %c0_12 = arith.constant 0 : index
    %23 = vector.load %arg6[%c0_11, %c0_12] : memref<1x1xf32, #tpu.memory_space<vmem>>, vector<1x1xf32>
    %24 = vector.shape_cast %20 : vector<8x1xf32> to vector<1x8x1xf32>
    %cst_13 = arith.constant dense<0.000000e+00> : vector<1xf32>
    %25 = vector.multi_reduction <add>, %24, %cst_13 [1, 2] : vector<1x8x1xf32> to vector<1xf32>
    %26 = vector.shape_cast %25 : vector<1xf32> to vector<1x1x1xf32>
    %27 = vector.extract %26[0, 0, 0] : f32 from vector<1x1x1xf32>
    %28 = vector.broadcast %27 : f32 to vector<1x1xf32>
    %29 = arith.addf %22, %28 : vector<1x1xf32>
    %30 = arith.addf %23, %29 : vector<1x1xf32>
    %c0_14 = arith.constant 0 : index
    %c0_15 = arith.constant 0 : index
    %31 = vector.load %arg6[%c0_14, %c0_15] : memref<1x1xf32, #tpu.memory_space<vmem>>, vector<1x1xf32>
    tpu.vector_store %arg6[%c0_14, %c0_15], %30 {strides = array<i32>} : memref<1x1xf32, #tpu.memory_space<vmem>>, vector<1x1xf32>,
    %c0_i32_16 = arith.constant 0 : i32
    %32 = arith.cmpi eq, %arg1, %c0_i32_16 : i32
    %33 = arith.extui %32 : i1 to i32
    %c0_i32_17 = arith.constant 0 : i32
    %34 = arith.cmpi ne, %33, %c0_i32_17 : i32
    scf.if %34 {
      %c0_18 = arith.constant 0 : index
      %c0_19 = arith.constant 0 : index
      %35 = vector.load %arg6[%c0_18, %c0_19] : memref<1x1xf32, #tpu.memory_space<vmem>>, vector<1x1xf32>
      %36 = vector.shape_cast %35 : vector<1x1xf32> to vector<1x1x1xf32>
      %c0_20 = arith.constant 0 : index
      %c0_21 = arith.constant 0 : index
      %c0_22 = arith.constant 0 : index
      %37 = vector.load %arg5[%c0_20, %c0_21, %c0_22] : memref<1x1x1xf32, #tpu.memory_space<vmem>>, vector<1x1x1xf32>
      tpu.vector_store %arg5[%c0_20, %c0_21, %c0_22], %36 {strides = array<i32>} : memref<1x1x1xf32, #tpu.memory_space<vmem>>, vector<1x1x1xf32>,
    } else {
    }
    return
  }
  func.func @transform_0(%arg0: i32, %arg1: i32) -> (i32, i32) {
    %c1_i32 = arith.constant 1 : i32
    %0 = arith.muli %arg0, %c1_i32 : i32
    %1 = arith.addi %0, %arg1 : i32
    %c0_i32 = arith.constant 0 : i32
    %2 = arith.minsi %1, %c0_i32 : i32
    %c0_i32_0 = arith.constant 0 : i32
    %c0_i32_1 = arith.constant 0 : i32
    return %2, %c0_i32_0 : i32, i32
  }
  func.func @transform_1(%arg0: i32, %arg1: i32) -> (i32, i32) {
    %c1_i32 = arith.constant 1 : i32
    %0 = arith.muli %arg0, %c1_i32 : i32
    %1 = arith.addi %0, %arg1 : i32
    %c0_i32 = arith.constant 0 : i32
    %2 = arith.minsi %1, %c0_i32 : i32
    %c0_i32_0 = arith.constant 0 : i32
    %c0_i32_1 = arith.constant 0 : i32
    return %2, %c0_i32_0 : i32, i32
  }
  func.func @transform_2(%arg0: i32, %arg1: i32) -> (i32, i32) {
    %c1_i32 = arith.constant 1 : i32
    %0 = arith.muli %arg0, %c1_i32 : i32
    %1 = arith.addi %0, %arg1 : i32
    %c0_i32 = arith.constant 0 : i32
    %2 = arith.minsi %1, %c0_i32 : i32
    %c0_i32_0 = arith.constant 0 : i32
    %c0_i32_1 = arith.constant 0 : i32
    return %c0_i32_0, %2 : i32, i32
  }
  func.func @transform_3(%arg0: i32, %arg1: i32) -> (i32, i32, i32) {
    %c0_i32 = arith.constant 0 : i32
    %c0_i32_0 = arith.constant 0 : i32
    %c0_i32_1 = arith.constant 0 : i32
    return %arg0, %c0_i32, %c0_i32_0 : i32, i32, i32
  }
}

</mosaic_0001>

<llo_original>
// kernel: tpu_custom_call.1
$region0: #{tpu_custom_call.1}
  #allocation0 [shape = 'u32[]', space=smem, size = 0x4, offset = 0x4, fixed_abs, tag = 'smem constant byte address 0x4 - core index']
  #allocation1 [shape = 'u32[144,128]{1,0:T(1,128)}', space=vmem, size = 0x12000, scoped, tag = 'internal scratch']
  #allocation2 [shape = 'f32[1,1]{1,0:T(1,128)}', space=vmem, size = 0x200, scoped, tag = 'scratch operand']
  %s0 = inlined_call_operand.hbm [shape: f32[8,32], index: 0, kind: input, shape index: {}]
  %s1 = inlined_call_operand.hbm [shape: f32[8,32], index: 1, kind: input, shape index: {}]
  %s2 = inlined_call_operand.vmem [shape: f32[1,8], index: 2, kind: input, shape index: {}]
  %s3 = inlined_call_operand.hbm [shape: f32[1,1,1], index: 3, kind: output, shape index: {}]
  %s4 = sld [smem:[#allocation0]]
  $region38: #{tpu_custom_call.1} parent=0
    _
  %s6 = ssub.s32 1, %s4
  %s7 = scalar_select 0, %s6, %s4
  $region1: #{tpu_custom_call.1} parent=0
    #allocation3 [shape = 'u8[4096]{0}', space=vmem, size = 0x1000, scoped, tag = 'input window, operand 0, single buffered']
    #allocation4 [shape = 's32[1]{0}', space=sflag, size = 0x4, scoped, tag = 'scoped memory for tpu_custom_call.1']
    #allocation5 [shape = 's32[1]{0}', space=sflag, size = 0x4, scoped, tag = 'scoped memory for tpu_custom_call.1']
    #allocation6 [shape = 'u8[4096]{0}', space=vmem, size = 0x1000, scoped, tag = 'input window, operand 1, single buffered']
    #allocation7 [shape = 's32[1]{0}', space=sflag, size = 0x4, scoped, tag = 'scoped memory for tpu_custom_call.1']
    #allocation8 [shape = 'u8[512]{0}', space=vmem, size = 0x400, scoped, tag = 'output window, operand 0, single buffered']
    %8 = vsyncpa [#allocation4], 0
    %9 = vsyncpa [#allocation7], 0
    %10 = vsyncpa [#allocation5], 0
    // Predicated region
    $region2: #{tpu_custom_call.1} parent=1 // pred_check
      _
    $region3: #{tpu_custom_call.1} parent=1 // pred_check_branch
      %12 = sbr.rel (0) target = $region5
    $region4: #{tpu_custom_call.1} parent=1 // pred_region
      %s13 = sadd.s32 0, 0
      %p14 = scmp.lt.s32.totalorder %s13, 0
      %s15 = scalar_select %p14, %s13, 0
      %s17 = ssub.s32 128, 128
      %18 = vsyncadd [#allocation4], %s17
      %s19 = smul.addr %s15, 128
      %s20 = scalar_lea.hbm %s0, %s19
      %s22 = sshll.u32 [#allocation3], 4
      %s23 = int_to_ptr.vmem [resolvable:$true] %s22
      %25 = dma.hbm_to_vmem [thread:$0]  %s20, 128, %s23, [#allocation4]
    $region5: #{tpu_custom_call.1} parent=1 // pred_fallthru
      _
    // Predicated region
    $region6: #{tpu_custom_call.1} parent=1 // pred_check
      _
    $region7: #{tpu_custom_call.1} parent=1 // pred_check_branch
      %27 = sbr.rel (0) target = $region9
    $region8: #{tpu_custom_call.1} parent=1 // pred_region
      %s28 = sadd.s32 0, 0
      %p29 = scmp.lt.s32.totalorder %s28, 0
      %s30 = scalar_select %p29, %s28, 0
      %s32 = ssub.s32 128, 128
      %33 = vsyncadd [#allocation7], %s32
      %s34 = smul.addr %s30, 128
      %s35 = scalar_lea.hbm %s1, %s34
      %s37 = sshll.u32 [#allocation6], 4
      %s38 = int_to_ptr.vmem [resolvable:$true] %s37
      %40 = dma.hbm_to_vmem [thread:$0]  %s35, 128, %s38, [#allocation7]
    $region9: #{tpu_custom_call.1} parent=1 // pred_fallthru
      _
    // Predicated region
    $region10: #{tpu_custom_call.1} parent=1 // pred_check
      _
    $region11: #{tpu_custom_call.1} parent=1 // pred_check_branch
      %42 = sbr.rel (0) target = $region13
    $region12: #{tpu_custom_call.1} parent=1 // pred_region
      %s43 = sadd.s32 0, 0
      %p44 = scmp.lt.s32.totalorder %s43, 0
      %s45 = scalar_select %p44, %s43, 0
      %p46 = scmp.lt.s32.totalorder %s45, 0
      %s47 = scalar_select %p46, %s45, 0
      %s48 = scalar_lea.vmem %s2, %s47
      %s49 = sadd.s32 0, 0
      %p50 = scmp.lt.s32.totalorder %s49, 0
      %s51 = scalar_select %p50, %s49, 0
    $region13: #{tpu_custom_call.1} parent=1 // pred_fallthru
      _
    // Predicated region
    $region14: #{tpu_custom_call.1} parent=1 // pred_check
      _
    $region15: #{tpu_custom_call.1} parent=1 // pred_check_branch
      %53 = sbr.rel (0) target = $region17
    $region16: #{tpu_custom_call.1} parent=1 // pred_region
      %54 = dma.done [#allocation4], 128
    $region17: #{tpu_custom_call.1} parent=1 // pred_fallthru
      _
    // Predicated region
    $region18: #{tpu_custom_call.1} parent=1 // pred_check
      _
    $region19: #{tpu_custom_call.1} parent=1 // pred_check_branch
      %56 = sbr.rel (0) target = $region21
    $region20: #{tpu_custom_call.1} parent=1 // pred_region
      %57 = dma.done [#allocation7], 128
    $region21: #{tpu_custom_call.1} parent=1 // pred_fallthru
      _
    %s58 = sadd.s32 0, 0
    %p59 = scmp.lt.s32.totalorder %s58, 0
    %s60 = scalar_select %p59, %s58, 0
    %p61 = scmp.lt.s32.totalorder %s60, 0
    %s62 = scalar_select %p61, %s60, 0
    %s63 = scalar_lea.vmem %s2, %s62
    %s64 = sadd.s32 0, 0
    %p65 = scmp.lt.s32.totalorder %s64, 0
    %s66 = scalar_select %p65, %s64, 0
    %s67 = sadd.s32 0, 0
    %p68 = scmp.lt.s32.totalorder %s67, 0
    %s69 = scalar_select %p68, %s67, 0
    %s70 = sadd.s32 0, 0
    %p71 = scmp.lt.s32.totalorder %s70, 0
    %s72 = scalar_select %p71, %s70, 0
    %p73 = scmp.lt.s32.totalorder %s72, 0
    %s74 = scalar_select %p73, %s72, 0
    %s75 = scalar_lea.vmem %s2, %s74
    %s76 = sadd.s32 0, 0
    %p77 = scmp.lt.s32.totalorder %s76, 0
    %s78 = scalar_select %p77, %s76, 0
    %p79 = scmp.eq.s32.totalorder 0, 0
    // Predicated region
    $region22: #{tpu_custom_call.1} parent=1 // pred_check
      %p80 = pneg %p79
    $region23: #{tpu_custom_call.1} parent=1 // pred_check_branch
      %82 = sbr.rel (%p80) target = $region25
    $region24: #{tpu_custom_call.1} parent=1 // pred_region
      %vm83 = vcmask 0
      %84 = vst.msk [vmem:[#allocation2] sm:$0x1] %vm83, 0.0
    $region25: #{tpu_custom_call.1} parent=1 // pred_fallthru
      _
    %v85 = vld [vmem:[#allocation3] sm:$0xff]
    %v86 = vld [vmem:[#allocation6] sm:$0xff]
    %v87 = vld [vmem:[%s75] sm:$0x1]
    %v88 = vmax.f32 %v87, 0.0
    %v89 = vsub.f32 %v85, %v86
    %v90 = vadd.f32 %v89, 1e-06
    %v91 = vmul.f32 %v90, %v90
    %vm92 = vcmask 261120
    %v93 = vsel %vm92, %v91, 0.0
    %94 = vadd.xlane.f32.xlu0 %v93
    %v95 = vpop.xlane.xlu0 %94
    %v96 = vrsqrt.pop %v95
    %v97 = vmul.f32 %v95, %v96
    %vm98 = vcmp.eq.f32.partialorder %v95, inf
    %v99 = vsel %vm98, %v95, %v97
    %vm100 = vcmp.eq.f32.partialorder %v95, 0.0
    %v101 = vand.u32 %v95, 2147483648
    %v102 = vsel %vm100, %v101, %v99
    %v103 = vsub.f32 2.0, %v102
    %v104 = vmax.f32 %v103, 0.0
    %v105 = vmul.f32 %v102, %v102
    %v106 = vmul.f32 %v104, %v104
    %v107 = vsub.f32 %v105, %v106
    %v108 = vld [vmem:[#allocation2] sm:$0x1]
    %vm109 = vcmask 7168
    %v110 = vsel %vm109, %v106, 0.0
    %111 = vadd.xlane.f32.xlu0 %v110
    %v112 = vpop.xlane.xlu0 %111
    %v113 = vrot.slane %v112, 4
    %v114 = vadd.f32 %v112, %v113
    %v115 = vrot.slane %v114, 2
    %v116 = vadd.f32 %v114, %v115
    %v117 = vrot.slane %v116, 1
    %v118 = vadd.f32 %v116, %v117
    %s119 = vtos %v118
    %v120 = vstv %s119
    %vm121 = vcmask 64512
    %v123 = vsel %vm121, %v88, 0
    %125 = vmatprep.subr.mxu0 0.0
    %126 = vmatpush1.msra.mxu0 %v107
    %127 = vmatprep.subr.mxu0 0.0
    %128 = vmatpush1.msra.mxu0 0.0
    %129 = vmatprep.subr.mxu0 0.0
    %130 = vmatpush1.msra.mxu0 0.0
    %131 = vmatprep.subr.mxu0 0.0
    %132 = vmatpush1.msra.mxu0 0.0
    %133 = vmatprep.subr.mxu0 0.0
    %134 = vmatpush1.msra.mxu0 0.0
    %135 = vmatprep.subr.mxu0 0.0
    %136 = vmatpush1.msra.mxu0 0.0
    %137 = vmatprep.subr.mxu0 0.0
    %138 = vmatpush1.msra.mxu0 0.0
    %139 = vmatprep.subr.mxu0 0.0
    %140 = vmatpush1.msra.mxu0 0.0
    %141 = vmatprep.subr.mxu0 0.0
    %142 = vmatpush1.msra.mxu0 0.0
    %143 = vmatprep.subr.mxu0 0.0
    %144 = vmatpush1.msra.mxu0 0.0
    %145 = vmatprep.subr.mxu0 0.0
    %146 = vmatpush1.msra.mxu0 0.0
    %147 = vmatprep.subr.mxu0 0.0
    %148 = vmatpush1.msra.mxu0 0.0
    %149 = vmatprep.subr.mxu0 0.0
    %150 = vmatpush1.msra.mxu0 0.0
    %151 = vmatprep.subr.mxu0 0.0
    %152 = vmatpush1.msra.mxu0 0.0
    %153 = vmatprep.subr.mxu0 0.0
    %154 = vmatpush1.msra.mxu0 0.0
    %155 = vmatprep.subr.mxu0 0.0
    %156 = vmatpush1.msra.mxu0 0.0
    %157 = vmatprep.subr.mxu0 0.0
    %158 = vmatpush1.msra.mxu0 0.0
    %159 = vmatprep.subr.mxu0 0.0
    %160 = vmatpush1.msra.mxu0 0.0
    %161 = vmatprep.subr.mxu0 0.0
    %162 = vmatpush1.msra.mxu0 0.0
    %163 = vmatprep.subr.mxu0 0.0
    %164 = vmatpush1.msra.mxu0 0.0
    %165 = vmatprep.subr.mxu0 0.0
    %166 = vmatpush1.msra.mxu0 0.0
    %167 = vmatprep.subr.mxu0 0.0
    %168 = vmatpush1.msra.mxu0 0.0
    %169 = vmatprep.subr.mxu0 0.0
    %170 = vmatpush1.msra.mxu0 0.0
    %171 = vmatprep.subr.mxu0 0.0
    %172 = vmatpush1.msra.mxu0 0.0
    %173 = vmatprep.subr.mxu0 0.0
    %174 = vmatpush1.msra.mxu0 0.0
    %175 = vmatprep.subr.mxu0 0.0
    %176 = vmatpush1.msra.mxu0 0.0
    %177 = vmatprep.subr.mxu0 0.0
    %178 = vmatpush1.msra.mxu0 0.0
    %179 = vmatprep.subr.mxu0 0.0
    %180 = vmatpush1.msra.mxu0 0.0
    %181 = vmatprep.subr.mxu0 0.0
    %182 = vmatpush1.msra.mxu0 0.0
    %183 = vmatprep.subr.mxu0 0.0
    %184 = vmatpush1.msra.mxu0 0.0
    %185 = vmatprep.subr.mxu0 0.0
    %186 = vmatpush1.msra.mxu0 0.0
    %187 = vmatprep.subr.mxu0 0.0
    %188 = vmatpush1.msra.mxu0 0.0
    %189 = vmatprep.mubr.f32.mxu0 0.0
    %190 = vmatmul.mubr.f32.gmra.mrb[0].mxu0 %v123
    %v191 = vpop.f32.mrb[0].mxu0
    %v192 = vadd.f32 %v120, %v191
    %v193 = vpop.f32.mrb[0].mxu0
    %194 = vdwg.mxu0
    %v195 = vadd.f32 %v108, %v192
    %vm196 = vcmask 0
    %197 = vst.msk [vmem:[#allocation2] sm:$0x1] %vm196, %v195
    // Predicated region
    $region26: #{tpu_custom_call.1} parent=1 // pred_check
      %p198 = pneg %p79
    $region27: #{tpu_custom_call.1} parent=1 // pred_check_branch
      %200 = sbr.rel (%p198) target = $region29
    $region28: #{tpu_custom_call.1} parent=1 // pred_region
      %v201 = vld [vmem:[#allocation2] sm:$0x1]
      %202 = vst.msk [vmem:[#allocation8] sm:$0x1] %vm196, %v201
    $region29: #{tpu_custom_call.1} parent=1 // pred_fallthru
      _
    // Predicated region
    $region30: #{tpu_custom_call.1} parent=1 // pred_check
      _
    $region31: #{tpu_custom_call.1} parent=1 // pred_check_branch
      %204 = sbr.rel (0) target = $region33
    $region32: #{tpu_custom_call.1} parent=1 // pred_region
      %s206 = ssub.s32 16, 16
      %207 = vsyncadd [#allocation5], %s206
      %s209 = sshll.u32 [#allocation8], 4
      %s210 = int_to_ptr.vmem [resolvable:$true] %s209
      %212 = dma.vmem_to_hbm [thread:$0]  %s210, 16, %s3, [#allocation5]
    $region33: #{tpu_custom_call.1} parent=1 // pred_fallthru
      _
    // Predicated region
    $region34: #{tpu_custom_call.1} parent=1 // pred_check
      _
    $region35: #{tpu_custom_call.1} parent=1 // pred_check_branch
      %214 = sbr.rel (0) target = $region37
    $region36: #{tpu_custom_call.1} parent=1 // pred_region
      %215 = dma.done [#allocation5], 16
    $region37: #{tpu_custom_call.1} parent=1 // pred_fallthru
      _
    %216 = vsyncpa [#allocation4], 1
    %217 = vsyncpa [#allocation7], 1
    %218 = vsyncpa [#allocation5], 1

</llo_original>
